<compile_context>
chip_gen: v5e
topology: v5e:2x2
jax: 0.10.0
libtpu: 0.0.40
codegen_flags: <defaults>
</compile_context>

<pallas_src>
import functools
import math

import jax
import jax.numpy as jnp
from jax.experimental import pallas as pl
from jax.experimental.pallas import tpu as pltpu


_GOLDEN = 0x9E3779B9   # 2^32 / golden ratio: seed / stream stride
_MIX1 = 0x7FEB352D     # lowbias32 finalizer constants
_MIX2 = 0x846CA68B


def _random_bits(shape, seed_u32, stream):
    """uint32 random bits of `shape` from a counter hash (splitmix32-style)."""
    rows, cols = shape
    r = jax.lax.broadcasted_iota(jnp.int32, (rows, cols), 0)
    c = jax.lax.broadcasted_iota(jnp.int32, (rows, cols), 1)
    idx = (r * jnp.int32(cols) + c).astype(jnp.uint32)
    z = idx + (seed_u32 + jnp.uint32(stream)) * jnp.uint32(_GOLDEN)
    z = z ^ (z >> 16)
    z = z * jnp.uint32(_MIX1)
    z = z ^ (z >> 15)
    z = z * jnp.uint32(_MIX2)
    z = z ^ (z >> 16)
    return z


def _bernoulli_stats_kernel(seed_ref,
                            mean_a_ref, std_a_ref, mean_b_ref, std_b_ref,
                            *, shape_a, shape_b, p_a, p_b):
    """Draw Bernoulli(p) samples for two (shape-only) tensors and emit
    mean / unbiased std as four (1, 1) f32 outputs."""
    seed_u32 = seed_ref[0].astype(jnp.uint32)

    def stats(shape, p, stream):
        bits = _random_bits(shape, seed_u32, stream)
        # P(bits < round(p * 2^32)) == p   (unsigned compare on raw bits).
        thresh = jnp.uint32(min(int(round(p * 4294967296.0)), 4294967295))
        samples = (bits < thresh).astype(jnp.float32)
        n = float(shape[0] * shape[1])
        # Single reduction: for 0/1 samples, sum(samples^2) == sum(samples).
        count = jnp.sum(samples, keepdims=True)              # (1, 1)
        mean = count * (1.0 / n)
        # Unbiased variance (torch.std default, correction=1). n > 1 assumed
        # (n == 1 would be NaN in torch as well).
        var = count * (n - count) * (1.0 / (n * (n - 1.0)))
        std = jnp.sqrt(jnp.maximum(var, 0.0))
        return mean, std

    m_a, s_a = stats(shape_a, p_a, 0)
    m_b, s_b = stats(shape_b, p_b, 1)
    mean_a_ref[...] = m_a
    std_a_ref[...] = s_a
    mean_b_ref[...] = m_b
    std_b_ref[...] = s_b


def bernoulli_float_forward(x, y, seed=0):
    """Equivalent of BernoulliFloatModule.forward(x, y).

    Returns (mean, std), each shape (2,), float32.  Only the shapes of x / y
    matter (bernoulli_ overwrites their values), so no tensor data is moved.
    """
    shape_a = (math.prod(x.shape[:-1]), x.shape[-1])
    shape_b = (math.prod(y.shape[:-1]), y.shape[-1])
    seed_arr = jnp.asarray([seed], dtype=jnp.int32)

    kernel = functools.partial(
        _bernoulli_stats_kernel,
        shape_a=shape_a, shape_b=shape_b, p_a=0.4, p_b=0.7)

    scalar = jax.ShapeDtypeStruct((1, 1), jnp.float32)
    m_a, s_a, m_b, s_b = pl.pallas_call(
        kernel,
        out_shape=(scalar, scalar, scalar, scalar),
        in_specs=[pl.BlockSpec(memory_space=pltpu.MemorySpace.SMEM)],  # seed
        out_specs=(pl.BlockSpec(memory_space=pltpu.MemorySpace.VMEM),) * 4,
    )(seed_arr)

    mean = jnp.concatenate([m_a.reshape(1), m_b.reshape(1)])  # shape (2,)
    std = jnp.concatenate([s_a.reshape(1), s_b.reshape(1)])   # shape (2,)
    return mean, std


if __name__ == "__main__":
    key = jax.random.PRNGKey(0)
    kx, ky = jax.random.split(key)

    # Rank-3 inputs like the annotated PyTorch module ([-1, -1, -1] float64).
    # Values are irrelevant (bernoulli_ overwrites them); shapes kept small.
    x = jax.random.normal(kx, (2, 8, 128), dtype=jnp.float32)
    y = jax.random.normal(ky, (4, 16, 128), dtype=jnp.float32)

    mean, std = bernoulli_float_forward(x, y, seed=1234)
    mean, std = jax.block_until_ready((mean, std))

    # Sanity: mean_a ~ 0.4, mean_b ~ 0.7, std ~ sqrt(p(1-p)).
    assert mean.shape == (2,) and std.shape == (2,)
    assert abs(float(mean[0]) - 0.4) < 0.1, mean
    assert abs(float(mean[1]) - 0.7) < 0.1, mean
    assert abs(float(std[0]) - (0.4 * 0.6) ** 0.5) < 0.1, std
    assert abs(float(std[1]) - (0.7 * 0.3) ** 0.5) < 0.1, std

    print("KERNEL_OK")
</pallas_src>

<mosaic_0001>
module attributes {stable_mosaic.version = 11 : i64} {
  func.func @_bernoulli_stats_kernel(%arg0: memref<1xi32, #tpu.memory_space<smem>>, %arg1: memref<1x1xf32, #tpu.memory_space<vmem>>, %arg2: memref<1x1xf32, #tpu.memory_space<vmem>>, %arg3: memref<1x1xf32, #tpu.memory_space<vmem>>, %arg4: memref<1x1xf32, #tpu.memory_space<vmem>>) attributes {dimension_semantics = [], scalar_prefetch = 0 : i64, scratch_operands = 0 : i64, tpu.core_type = #tpu.core_type<tc>} {
    %c0 = arith.constant 0 : index
    %0 = memref.load %arg0[%c0] : memref<1xi32, #tpu.memory_space<smem>>
    %1 = tpu.iota {dimensions = array<i32: 0>} : vector<16x128xi32>
    %2 = tpu.iota {dimensions = array<i32: 1>} : vector<16x128xi32>
    %c128_i32 = arith.constant 128 : i32
    %3 = vector.broadcast %c128_i32 : i32 to vector<16x128xi32>
    %4 = arith.muli %1, %3 : vector<16x128xi32>
    %5 = arith.addi %4, %2 : vector<16x128xi32>
    %c0_i32 = arith.constant 0 : i32
    %6 = arith.addi %0, %c0_i32 : i32
    %c-1640531527_i32 = arith.constant -1640531527 : i32
    %7 = arith.muli %6, %c-1640531527_i32 : i32
    %8 = vector.broadcast %7 : i32 to vector<16x128xi32>
    %9 = arith.addi %5, %8 : vector<16x128xi32>
    %c16_i32 = arith.constant 16 : i32
    %10 = vector.broadcast %c16_i32 : i32 to vector<16x128xi32>
    %11 = arith.shrui %9, %10 : vector<16x128xi32>
    %12 = arith.xori %9, %11 : vector<16x128xi32>
    %c2146121005_i32 = arith.constant 2146121005 : i32
    %13 = vector.broadcast %c2146121005_i32 : i32 to vector<16x128xi32>
    %14 = arith.muli %12, %13 : vector<16x128xi32>
    %c15_i32 = arith.constant 15 : i32
    %15 = vector.broadcast %c15_i32 : i32 to vector<16x128xi32>
    %16 = arith.shrui %14, %15 : vector<16x128xi32>
    %17 = arith.xori %14, %16 : vector<16x128xi32>
    %c-2073254261_i32 = arith.constant -2073254261 : i32
    %18 = vector.broadcast %c-2073254261_i32 : i32 to vector<16x128xi32>
    %19 = arith.muli %17, %18 : vector<16x128xi32>
    %c16_i32_0 = arith.constant 16 : i32
    %20 = vector.broadcast %c16_i32_0 : i32 to vector<16x128xi32>
    %21 = arith.shrui %19, %20 : vector<16x128xi32>
    %22 = arith.xori %19, %21 : vector<16x128xi32>
    %c1717986918_i32 = arith.constant 1717986918 : i32
    %23 = vector.broadcast %c1717986918_i32 : i32 to vector<16x128xi32>
    %24 = arith.cmpi ult, %22, %23 : vector<16x128xi32>
    %25 = arith.extui %24 : vector<16x128xi1> to vector<16x128xi32>
    %26 = arith.sitofp %25 : vector<16x128xi32> to vector<16x128xf32>
    %27 = vector.shape_cast %26 : vector<16x128xf32> to vector<1x16x128xf32>
    %cst = arith.constant dense<0.000000e+00> : vector<1xf32>
    %28 = vector.multi_reduction <add>, %27, %cst [1, 2] : vector<1x16x128xf32> to vector<1xf32>
    %29 = vector.shape_cast %28 : vector<1xf32> to vector<1x1x1xf32>
    %30 = vector.extract %29[0, 0, 0] : f32 from vector<1x1x1xf32>
    %31 = vector.broadcast %30 : f32 to vector<1x1xf32>
    %cst_1 = arith.constant 4.8828125E-4 : f32
    %32 = vector.broadcast %cst_1 : f32 to vector<1x1xf32>
    %33 = arith.mulf %31, %32 : vector<1x1xf32>
    %cst_2 = arith.constant 2.048000e+03 : f32
    %34 = vector.broadcast %cst_2 : f32 to vector<1x1xf32>
    %35 = arith.subf %34, %31 : vector<1x1xf32>
    %36 = arith.mulf %31, %35 : vector<1x1xf32>
    %cst_3 = arith.constant 2.38535051E-7 : f32
    %37 = vector.broadcast %cst_3 : f32 to vector<1x1xf32>
    %38 = arith.mulf %36, %37 : vector<1x1xf32>
    %cst_4 = arith.constant 0.000000e+00 : f32
    %39 = vector.broadcast %cst_4 : f32 to vector<1x1xf32>
    %40 = arith.maximumf %38, %39 : vector<1x1xf32>
    %41 = math.sqrt %40 : vector<1x1xf32>
    %42 = tpu.iota {dimensions = array<i32: 0>} : vector<64x128xi32>
    %43 = tpu.iota {dimensions = array<i32: 1>} : vector<64x128xi32>
    %c128_i32_5 = arith.constant 128 : i32
    %44 = vector.broadcast %c128_i32_5 : i32 to vector<64x128xi32>
    %45 = arith.muli %42, %44 : vector<64x128xi32>
    %46 = arith.addi %45, %43 : vector<64x128xi32>
    %c1_i32 = arith.constant 1 : i32
    %47 = arith.addi %0, %c1_i32 : i32
    %c-1640531527_i32_6 = arith.constant -1640531527 : i32
    %48 = arith.muli %47, %c-1640531527_i32_6 : i32
    %49 = vector.broadcast %48 : i32 to vector<64x128xi32>
    %50 = arith.addi %46, %49 : vector<64x128xi32>
    %c16_i32_7 = arith.constant 16 : i32
    %51 = vector.broadcast %c16_i32_7 : i32 to vector<64x128xi32>
    %52 = arith.shrui %50, %51 : vector<64x128xi32>
    %53 = arith.xori %50, %52 : vector<64x128xi32>
    %c2146121005_i32_8 = arith.constant 2146121005 : i32
    %54 = vector.broadcast %c2146121005_i32_8 : i32 to vector<64x128xi32>
    %55 = arith.muli %53, %54 : vector<64x128xi32>
    %c15_i32_9 = arith.constant 15 : i32
    %56 = vector.broadcast %c15_i32_9 : i32 to vector<64x128xi32>
    %57 = arith.shrui %55, %56 : vector<64x128xi32>
    %58 = arith.xori %55, %57 : vector<64x128xi32>
    %c-2073254261_i32_10 = arith.constant -2073254261 : i32
    %59 = vector.broadcast %c-2073254261_i32_10 : i32 to vector<64x128xi32>
    %60 = arith.muli %58, %59 : vector<64x128xi32>
    %c16_i32_11 = arith.constant 16 : i32
    %61 = vector.broadcast %c16_i32_11 : i32 to vector<64x128xi32>
    %62 = arith.shrui %60, %61 : vector<64x128xi32>
    %63 = arith.xori %60, %62 : vector<64x128xi32>
    %c-1288490189_i32 = arith.constant -1288490189 : i32
    %64 = vector.broadcast %c-1288490189_i32 : i32 to vector<64x128xi32>
    %65 = arith.cmpi ult, %63, %64 : vector<64x128xi32>
    %66 = arith.extui %65 : vector<64x128xi1> to vector<64x128xi32>
    %67 = arith.sitofp %66 : vector<64x128xi32> to vector<64x128xf32>
    %68 = vector.shape_cast %67 : vector<64x128xf32> to vector<1x64x128xf32>
    %cst_12 = arith.constant dense<0.000000e+00> : vector<1xf32>
    %69 = vector.multi_reduction <add>, %68, %cst_12 [1, 2] : vector<1x64x128xf32> to vector<1xf32>
    %70 = vector.shape_cast %69 : vector<1xf32> to vector<1x1x1xf32>
    %71 = vector.extract %70[0, 0, 0] : f32 from vector<1x1x1xf32>
    %72 = vector.broadcast %71 : f32 to vector<1x1xf32>
    %cst_13 = arith.constant 1.22070313E-4 : f32
    %73 = vector.broadcast %cst_13 : f32 to vector<1x1xf32>
    %74 = arith.mulf %72, %73 : vector<1x1xf32>
    %cst_14 = arith.constant 8.192000e+03 : f32
    %75 = vector.broadcast %cst_14 : f32 to vector<1x1xf32>
    %76 = arith.subf %75, %72 : vector<1x1xf32>
    %77 = arith.mulf %72, %76 : vector<1x1xf32>
    %cst_15 = arith.constant 1.49029802E-8 : f32
    %78 = vector.broadcast %cst_15 : f32 to vector<1x1xf32>
    %79 = arith.mulf %77, %78 : vector<1x1xf32>
    %cst_16 = arith.constant 0.000000e+00 : f32
    %80 = vector.broadcast %cst_16 : f32 to vector<1x1xf32>
    %81 = arith.maximumf %79, %80 : vector<1x1xf32>
    %82 = math.sqrt %81 : vector<1x1xf32>
    %c0_17 = arith.constant 0 : index
    %c0_18 = arith.constant 0 : index
    %83 = vector.load %arg1[%c0_17, %c0_18] : memref<1x1xf32, #tpu.memory_space<vmem>>, vector<1x1xf32>
    tpu.vector_store %arg1[%c0_17, %c0_18], %33 {strides = array<i32>} : memref<1x1xf32, #tpu.memory_space<vmem>>, vector<1x1xf32>,
    %c0_19 = arith.constant 0 : index
    %c0_20 = arith.constant 0 : index
    %84 = vector.load %arg2[%c0_19, %c0_20] : memref<1x1xf32, #tpu.memory_space<vmem>>, vector<1x1xf32>
    tpu.vector_store %arg2[%c0_19, %c0_20], %41 {strides = array<i32>} : memref<1x1xf32, #tpu.memory_space<vmem>>, vector<1x1xf32>,
    %c0_21 = arith.constant 0 : index
    %c0_22 = arith.constant 0 : index
    %85 = vector.load %arg3[%c0_21, %c0_22] : memref<1x1xf32, #tpu.memory_space<vmem>>, vector<1x1xf32>
    tpu.vector_store %arg3[%c0_21, %c0_22], %74 {strides = array<i32>} : memref<1x1xf32, #tpu.memory_space<vmem>>, vector<1x1xf32>,
    %c0_23 = arith.constant 0 : index
    %c0_24 = arith.constant 0 : index
    %86 = vector.load %arg4[%c0_23, %c0_24] : memref<1x1xf32, #tpu.memory_space<vmem>>, vector<1x1xf32>
    tpu.vector_store %arg4[%c0_23, %c0_24], %82 {strides = array<i32>} : memref<1x1xf32, #tpu.memory_space<vmem>>, vector<1x1xf32>,
    return
  }
}

</mosaic_0001>

<llo_original>
// kernel: tpu_custom_call.1
$region0: #{tpu_custom_call.1}
  #allocation0 [shape = 'u32[]', space=smem, size = 0x4, offset = 0x4, fixed_abs, tag = 'smem constant byte address 0x4 - core index']
  #allocation1 [shape = 'u32[72,128]{1,0:T(1,128)}', space=vmem, size = 0x9000, scoped, tag = 'internal scratch']
  #allocation2 [shape = 's32[1]{0:T(128)S(6)}', space=smem, size = 0x200, scoped, tag = 'scoped memory for tpu_custom_call.1']
  %s0 = inlined_call_operand.<no memory space> [shape: s32[1], index: 0, kind: input, shape index: {}]
  %s1 = inlined_call_operand.hbm [shape: f32[1,1], index: 1, kind: output, shape index: {0}]
  %s2 = inlined_call_operand.hbm [shape: f32[1,1], index: 2, kind: output, shape index: {1}]
  %s3 = inlined_call_operand.hbm [shape: f32[1,1], index: 3, kind: output, shape index: {2}]
  %s4 = inlined_call_operand.hbm [shape: f32[1,1], index: 4, kind: output, shape index: {3}]
  %5 = xla_tuple %s1, %s2, %s3, %s4
  %s6 = sld [smem:[#allocation0]]
  $region38: #{tpu_custom_call.1} parent=0
    _
  %s8 = ssub.s32 1, %s6
  %s9 = scalar_select 0, %s8, %s6
  %10 = sst [smem:[#allocation2]] %s0
  $region1: #{tpu_custom_call.1} parent=0
    #allocation3 [shape = 'u8[512]{0}', space=vmem, size = 0x400, scoped, tag = 'output window, operand 0, single buffered']
    #allocation4 [shape = 's32[1]{0}', space=sflag, size = 0x4, scoped, tag = 'scoped memory for tpu_custom_call.1']
    #allocation5 [shape = 'u8[512]{0}', space=vmem, size = 0x400, scoped, tag = 'output window, operand 1, single buffered']
    #allocation6 [shape = 's32[1]{0}', space=sflag, size = 0x4, scoped, tag = 'scoped memory for tpu_custom_call.1']
    #allocation7 [shape = 'u8[512]{0}', space=vmem, size = 0x400, scoped, tag = 'output window, operand 2, single buffered']
    #allocation8 [shape = 'u8[512]{0}', space=vmem, size = 0x400, scoped, tag = 'output window, operand 3, single buffered']
    #allocation9 [shape = 's32[1]{0}', space=sflag, size = 0x4, scoped, tag = 'scoped memory for tpu_custom_call.1']
    %11 = vsyncpa [#allocation4], 0
    %12 = vsyncpa [#allocation6], 0
    %13 = vsyncpa [#allocation9], 0
    // Predicated region
    $region2: #{tpu_custom_call.1} parent=1 // pred_check
      _
    $region3: #{tpu_custom_call.1} parent=1 // pred_check_branch
      %15 = sbr.rel (0) target = $region5
    $region4: #{tpu_custom_call.1} parent=1 // pred_region
      _
    $region5: #{tpu_custom_call.1} parent=1 // pred_fallthru
      _
    %s16 = sld [smem:[#allocation2]]
    %v17 = vlaneseq
    %v18 = vshrl.u32 %v17, 7
    %v19 = vadd.s32 %v18, 8
    %v20 = vlaneseq
    %v21 = vand.u32 %v20, 127
    %v22 = vmul.u32 %v18, 128
    %v23 = vmul.u32 %v19, 128
    %v24 = vadd.s32 %v22, %v21
    %v25 = vadd.s32 %v23, %v21
    %s26 = smul.u32 %s16, 2654435769
    %v27 = vstv %s26
    %v28 = vadd.s32 %v24, %v27
    %v29 = vadd.s32 %v25, %v27
    %v30 = vshrl.u32 %v28, 16
    %v31 = vshrl.u32 %v29, 16
    %v32 = vxor.u32 %v28, %v30
    %v33 = vxor.u32 %v29, %v31
    %v34 = vmul.u32 %v32, 2146121005
    %v35 = vmul.u32 %v33, 2146121005
    %v36 = vshrl.u32 %v34, 15
    %v37 = vshrl.u32 %v35, 15
    %v38 = vxor.u32 %v34, %v36
    %v39 = vxor.u32 %v35, %v37
    %v40 = vmul.u32 %v38, 2221713035
    %v41 = vmul.u32 %v39, 2221713035
    %v42 = vshrl.u32 %v40, 16
    %v43 = vshrl.u32 %v41, 16
    %v44 = vxor.u32 %v40, %v42
    %v45 = vxor.u32 %v41, %v43
    %v46 = vadd.s32 %v44, 2147483648
    %vm48 = vcmp.lt.s32.totalorder %v46, 3865470566
    %v49 = vadd.s32 %v45, 2147483648
    %vm51 = vcmp.lt.s32.totalorder %v49, 3865470566
    %v52 = vsel %vm48, 1, 0
    %v53 = vsel %vm51, 1, 0
    %v54 = vcvt.s32.f32 %v52
    %v55 = vcvt.s32.f32 %v53
    %v56 = vadd.f32 %v54, %v55
    %57 = vadd.xlane.f32.xlu0 %v56
    %v58 = vpop.xlane.xlu0 %57
    %v59 = vrot.slane %v58, 4
    %v60 = vadd.f32 %v58, %v59
    %v61 = vrot.slane %v60, 2
    %v62 = vadd.f32 %v60, %v61
    %v63 = vrot.slane %v62, 1
    %v64 = vadd.f32 %v62, %v63
    %s65 = vtos %v64
    %v66 = vstv %s65
    %v67 = vmul.f32 %v66, 0.00048828125
    %v68 = vsub.f32 2048.0, %v66
    %v69 = vmul.f32 %v66, %v68
    %v70 = vmul.f32 %v69, 2.3853505e-07
    %v71 = vmax.f32 %v70, 0.0
    %v72 = vrsqrt.pop %v71
    %v73 = vmul.f32 %v72, %v71
    %v74 = vmul.f32 %v73, %v72
    %v75 = vmul.f32 0.5, %v74
    %v76 = vsub.f32 1.5, %v75
    %v77 = vmul.f32 %v72, %v76
    %v78 = vmul.f32 %v71, %v77
    %vm79 = vcmp.eq.f32.partialorder %v71, inf
    %v80 = vsel %vm79, %v71, %v78
    %vm81 = vcmp.eq.f32.partialorder %v71, 0.0
    %v82 = vand.u32 %v71, 2147483648
    %v83 = vsel %vm81, %v82, %v80
    %v84 = vadd.s32 %v18, 16
    %v85 = vadd.s32 %v18, 24
    %v86 = vadd.s32 %v18, 32
    %v87 = vadd.s32 %v18, 40
    %v88 = vadd.s32 %v18, 48
    %v89 = vadd.s32 %v18, 56
    %v90 = vmul.u32 %v84, 128
    %v91 = vmul.u32 %v85, 128
    %v92 = vmul.u32 %v86, 128
    %v93 = vmul.u32 %v87, 128
    %v94 = vmul.u32 %v88, 128
    %v95 = vmul.u32 %v89, 128
    %v96 = vadd.s32 %v90, %v21
    %v97 = vadd.s32 %v91, %v21
    %v98 = vadd.s32 %v92, %v21
    %v99 = vadd.s32 %v93, %v21
    %v100 = vadd.s32 %v94, %v21
    %v101 = vadd.s32 %v95, %v21
    %s102 = sadd.s32 %s16, 1
    %s103 = smul.u32 %s102, 2654435769
    %v104 = vstv %s103
    %v105 = vadd.s32 %v24, %v104
    %v106 = vadd.s32 %v25, %v104
    %v107 = vadd.s32 %v96, %v104
    %v108 = vadd.s32 %v97, %v104
    %v109 = vadd.s32 %v98, %v104
    %v110 = vadd.s32 %v99, %v104
    %v111 = vadd.s32 %v100, %v104
    %v112 = vadd.s32 %v101, %v104
    %v113 = vshrl.u32 %v105, 16
    %v114 = vshrl.u32 %v106, 16
    %v115 = vshrl.u32 %v107, 16
    %v116 = vshrl.u32 %v108, 16
    %v117 = vshrl.u32 %v109, 16
    %v118 = vshrl.u32 %v110, 16
    %v119 = vshrl.u32 %v111, 16
    %v120 = vshrl.u32 %v112, 16
    %v121 = vxor.u32 %v105, %v113
    %v122 = vxor.u32 %v106, %v114
    %v123 = vxor.u32 %v107, %v115
    %v124 = vxor.u32 %v108, %v116
    %v125 = vxor.u32 %v109, %v117
    %v126 = vxor.u32 %v110, %v118
    %v127 = vxor.u32 %v111, %v119
    %v128 = vxor.u32 %v112, %v120
    %v129 = vmul.u32 %v121, 2146121005
    %v130 = vmul.u32 %v122, 2146121005
    %v131 = vmul.u32 %v123, 2146121005
    %v132 = vmul.u32 %v124, 2146121005
    %v133 = vmul.u32 %v125, 2146121005
    %v134 = vmul.u32 %v126, 2146121005
    %v135 = vmul.u32 %v127, 2146121005
    %v136 = vmul.u32 %v128, 2146121005
    %v137 = vshrl.u32 %v129, 15
    %v138 = vshrl.u32 %v130, 15
    %v139 = vshrl.u32 %v131, 15
    %v140 = vshrl.u32 %v132, 15
    %v141 = vshrl.u32 %v133, 15
    %v142 = vshrl.u32 %v134, 15
    %v143 = vshrl.u32 %v135, 15
    %v144 = vshrl.u32 %v136, 15
    %v145 = vxor.u32 %v129, %v137
    %v146 = vxor.u32 %v130, %v138
    %v147 = vxor.u32 %v131, %v139
    %v148 = vxor.u32 %v132, %v140
    %v149 = vxor.u32 %v133, %v141
    %v150 = vxor.u32 %v134, %v142
    %v151 = vxor.u32 %v135, %v143
    %v152 = vxor.u32 %v136, %v144
    %v153 = vmul.u32 %v145, 2221713035
    %v154 = vmul.u32 %v146, 2221713035
    %v155 = vmul.u32 %v147, 2221713035
    %v156 = vmul.u32 %v148, 2221713035
    %v157 = vmul.u32 %v149, 2221713035
    %v158 = vmul.u32 %v150, 2221713035
    %v159 = vmul.u32 %v151, 2221713035
    %v160 = vmul.u32 %v152, 2221713035
    %v161 = vshrl.u32 %v153, 16
    %v162 = vshrl.u32 %v154, 16
    %v163 = vshrl.u32 %v155, 16
    %v164 = vshrl.u32 %v156, 16
    %v165 = vshrl.u32 %v157, 16
    %v166 = vshrl.u32 %v158, 16
    %v167 = vshrl.u32 %v159, 16
    %v168 = vshrl.u32 %v160, 16
    %v169 = vxor.u32 %v153, %v161
    %v170 = vxor.u32 %v154, %v162
    %v171 = vxor.u32 %v155, %v163
    %v172 = vxor.u32 %v156, %v164
    %v173 = vxor.u32 %v157, %v165
    %v174 = vxor.u32 %v158, %v166
    %v175 = vxor.u32 %v159, %v167
    %v176 = vxor.u32 %v160, %v168
    %v177 = vadd.s32 %v169, 2147483648
    %vm179 = vcmp.lt.s32.totalorder %v177, 858993459
    %v180 = vadd.s32 %v170, 2147483648
    %vm182 = vcmp.lt.s32.totalorder %v180, 858993459
    %v183 = vadd.s32 %v171, 2147483648
    %vm185 = vcmp.lt.s32.totalorder %v183, 858993459
    %v186 = vadd.s32 %v172, 2147483648
    %vm188 = vcmp.lt.s32.totalorder %v186, 858993459
    %v189 = vadd.s32 %v173, 2147483648
    %vm191 = vcmp.lt.s32.totalorder %v189, 858993459
    %v192 = vadd.s32 %v174, 2147483648
    %vm194 = vcmp.lt.s32.totalorder %v192, 858993459
    %v195 = vadd.s32 %v175, 2147483648
    %vm197 = vcmp.lt.s32.totalorder %v195, 858993459
    %v198 = vadd.s32 %v176, 2147483648
    %vm200 = vcmp.lt.s32.totalorder %v198, 858993459
    %v201 = vsel %vm179, 1, 0
    %v202 = vsel %vm182, 1, 0
    %v203 = vsel %vm185, 1, 0
    %v204 = vsel %vm188, 1, 0
    %v205 = vsel %vm191, 1, 0
    %v206 = vsel %vm194, 1, 0
    %v207 = vsel %vm197, 1, 0
    %v208 = vsel %vm200, 1, 0
    %v209 = vcvt.s32.f32 %v201
    %v210 = vcvt.s32.f32 %v202
    %v211 = vcvt.s32.f32 %v203
    %v212 = vcvt.s32.f32 %v204
    %v213 = vcvt.s32.f32 %v205
    %v214 = vcvt.s32.f32 %v206
    %v215 = vcvt.s32.f32 %v207
    %v216 = vcvt.s32.f32 %v208
    %v217 = vadd.f32 %v209, %v210
    %v218 = vadd.f32 %v217, %v211
    %v219 = vadd.f32 %v218, %v212
    %v220 = vadd.f32 %v219, %v213
    %v221 = vadd.f32 %v220, %v214
    %v222 = vadd.f32 %v221, %v215
    %v223 = vadd.f32 %v222, %v216
    %224 = vadd.xlane.f32.xlu0 %v223
    %v225 = vpop.xlane.xlu0 %224
    %v226 = vrot.slane %v225, 4
    %v227 = vadd.f32 %v225, %v226
    %v228 = vrot.slane %v227, 2
    %v229 = vadd.f32 %v227, %v228
    %v230 = vrot.slane %v229, 1
    %v231 = vadd.f32 %v229, %v230
    %s232 = vtos %v231
    %v233 = vstv %s232
    %v234 = vmul.f32 %v233, 0.00012207031
    %v235 = vsub.f32 8192.0, %v233
    %v236 = vmul.f32 %v233, %v235
    %v237 = vmul.f32 %v236, 1.490298e-08
    %v238 = vmax.f32 %v237, 0.0
    %v239 = vrsqrt.pop %v238
    %v240 = vmul.f32 %v239, %v238
    %v241 = vmul.f32 %v240, %v239
    %v242 = vmul.f32 0.5, %v241
    %v243 = vsub.f32 1.5, %v242
    %v244 = vmul.f32 %v239, %v243
    %v245 = vmul.f32 %v238, %v244
    %vm246 = vcmp.eq.f32.partialorder %v238, inf
    %v247 = vsel %vm246, %v238, %v245
    %vm248 = vcmp.eq.f32.partialorder %v238, 0.0
    %v249 = vand.u32 %v238, 2147483648
    %v250 = vsel %vm248, %v249, %v247
    %vm251 = vcmask 0
    %252 = vst.msk [vmem:[#allocation3] sm:$0x1] %vm251, %v67
    %253 = vst.msk [vmem:[#allocation5] sm:$0x1] %vm251, %v83
    %254 = vst.msk [vmem:[#allocation7] sm:$0x1] %vm251, %v234
    %255 = vst.msk [vmem:[#allocation8] sm:$0x1] %vm251, %v250
    // Predicated region
    $region6: #{tpu_custom_call.1} parent=1 // pred_check
      _
    $region7: #{tpu_custom_call.1} parent=1 // pred_check_branch
      %257 = sbr.rel (0) target = $region9
    $region8: #{tpu_custom_call.1} parent=1 // pred_region
      %259 = vsyncadd [#allocation4], 0
      %s261 = sshll.u32 [#allocation3], 4
      %s262 = int_to_ptr.vmem [resolvable:$true] %s261
      %s263 = sshll.u32 %s1, 4
      %s264 = int_to_ptr.hbm [resolvable:$true] %s263
      %266 = dma.vmem_to_hbm [thread:$0]  %s262, 16, %s264, [#allocation4]
    $region9: #{tpu_custom_call.1} parent=1 // pred_fallthru
      _
    // Predicated region
    $region10: #{tpu_custom_call.1} parent=1 // pred_check
      _
    $region11: #{tpu_custom_call.1} parent=1 // pred_check_branch
      %268 = sbr.rel (0) target = $region13
    $region12: #{tpu_custom_call.1} parent=1 // pred_region
      %270 = vsyncadd [#allocation6], 0
      %s272 = sshll.u32 [#allocation5], 4
      %s273 = int_to_ptr.vmem [resolvable:$true] %s272
      %s274 = sshll.u32 %s2, 4
      %s275 = int_to_ptr.hbm [resolvable:$true] %s274
      %277 = dma.vmem_to_hbm [thread:$0]  %s273, 16, %s275, [#allocation6]
    $region13: #{tpu_custom_call.1} parent=1 // pred_fallthru
      _
    // Predicated region
    $region14: #{tpu_custom_call.1} parent=1 // pred_check
      _
    $region15: #{tpu_custom_call.1} parent=1 // pred_check_branch
      %279 = sbr.rel (0) target = $region17
    $region16: #{tpu_custom_call.1} parent=1 // pred_region
      %281 = vsyncadd [#allocation6], 0
      %s283 = sshll.u32 [#allocation7], 4
      %s284 = int_to_ptr.vmem [resolvable:$true] %s283
      %s285 = sshll.u32 %s3, 4
      %s286 = int_to_ptr.hbm [resolvable:$true] %s285
      %288 = dma.vmem_to_hbm [thread:$0]  %s284, 16, %s286, [#allocation6]
    $region17: #{tpu_custom_call.1} parent=1 // pred_fallthru
      _
    // Predicated region
    $region18: #{tpu_custom_call.1} parent=1 // pred_check
      _
    $region19: #{tpu_custom_call.1} parent=1 // pred_check_branch
      %290 = sbr.rel (0) target = $region21
    $region20: #{tpu_custom_call.1} parent=1 // pred_region
      %292 = vsyncadd [#allocation9], 0
      %s294 = sshll.u32 [#allocation8], 4
      %s295 = int_to_ptr.vmem [resolvable:$true] %s294
      %s296 = sshll.u32 %s4, 4
      %s297 = int_to_ptr.hbm [resolvable:$true] %s296
      %299 = dma.vmem_to_hbm [thread:$0]  %s295, 16, %s297, [#allocation9]
    $region21: #{tpu_custom_call.1} parent=1 // pred_fallthru
      _
    // Predicated region
    $region22: #{tpu_custom_call.1} parent=1 // pred_check
      _
    $region23: #{tpu_custom_call.1} parent=1 // pred_check_branch
      %301 = sbr.rel (0) target = $region25
    $region24: #{tpu_custom_call.1} parent=1 // pred_region
      %303 = dma.done [#allocation4], 16
    $region25: #{tpu_custom_call.1} parent=1 // pred_fallthru
      _
    // Predicated region
    $region26: #{tpu_custom_call.1} parent=1 // pred_check
      _
    $region27: #{tpu_custom_call.1} parent=1 // pred_check_branch
      %305 = sbr.rel (0) target = $region29
    $region28: #{tpu_custom_call.1} parent=1 // pred_region
      %307 = dma.done [#allocation6], 16
    $region29: #{tpu_custom_call.1} parent=1 // pred_fallthru
      _
    // Predicated region
    $region30: #{tpu_custom_call.1} parent=1 // pred_check
      _
    $region31: #{tpu_custom_call.1} parent=1 // pred_check_branch
      %309 = sbr.rel (0) target = $region33
    $region32: #{tpu_custom_call.1} parent=1 // pred_region
      %311 = dma.done [#allocation6], 16
    $region33: #{tpu_custom_call.1} parent=1 // pred_fallthru
      _
    // Predicated region
    $region34: #{tpu_custom_call.1} parent=1 // pred_check
      _
    $region35: #{tpu_custom_call.1} parent=1 // pred_check_branch
      %313 = sbr.rel (0) target = $region37
    $region36: #{tpu_custom_call.1} parent=1 // pred_region
      %315 = dma.done [#allocation9], 16
    $region37: #{tpu_custom_call.1} parent=1 // pred_fallthru
      _
    %316 = vsyncpa [#allocation4], 1
    %317 = vsyncpa [#allocation6], 1
    %318 = vsyncpa [#allocation9], 1

</llo_original>
